<compile_context>
chip_gen: v6e
topology: v6e:2x2x1
jax: 0.10.0
libtpu: 0.0.40
codegen_flags: <defaults>
</compile_context>

<pallas_src>
import jax
import jax.numpy as jnp
from jax.experimental import pallas as pl
from jax.experimental.pallas import tpu as pltpu

# ----------------------------- model config ---------------------------------
OBS_DIM = 17
ACTION_DIM = 6
REW_DIM = 3
NET_ARCH = [256, 256]        # QNetwork default net_arch
IN_DIM = OBS_DIM + ACTION_DIM + REW_DIM
LN_EPS = 1e-5                # torch.nn.LayerNorm default eps


# ------------------------------ Pallas kernel --------------------------------
def _layernorm(h, gamma, beta):
    # Two-pass mean/variance (matches torch semantics; avoids the one-pass
    # E[h^2]-E[h]^2 cancellation). One extra XLU reduce per layer -- the
    # kernel is nowhere near XLU-bound.
    mu = jnp.mean(h, axis=-1, keepdims=True)
    var = jnp.mean(jnp.square(h - mu), axis=-1, keepdims=True)
    return (h - mu) * jax.lax.rsqrt(var + LN_EPS) * gamma + beta


def qnetwork_kernel(x_ref, w1_ref, p1_ref, w2_ref, p2_ref, w3_ref, b3_ref,
                    out_ref):
    # Hidden layer 1: one MXU dot over the concatenated (obs, action, w) input.
    # bf16 operands / f32 accumulation -> native MXU rate on v5e/v6e/v7x.
    h = jnp.dot(x_ref[...], w1_ref[...], preferred_element_type=jnp.float32)
    h = h + p1_ref[0:1, :]                           # bias
    # TODO(synk): nn.Dropout(p=0.01) omitted -- identity in eval mode.
    h = _layernorm(h, p1_ref[1:2, :], p1_ref[2:3, :])
    h = jnp.maximum(h, 0.0)

    # Hidden layer 2 (the dominant 256x256 dot)
    h = jnp.dot(h.astype(jnp.bfloat16), w2_ref[...],
                preferred_element_type=jnp.float32) + p2_ref[0:1, :]
    h = _layernorm(h, p2_ref[1:2, :], p2_ref[2:3, :])
    h = jnp.maximum(h, 0.0)

    # Output head. Unpadded (REW_DIM lanes): the masked store writes 12 B/row
    # instead of 512 B/row for a 128-lane padded head.
    q = jnp.dot(h.astype(jnp.bfloat16), w3_ref[...],
                preferred_element_type=jnp.float32) + b3_ref[...]
    out_ref[...] = q.astype(out_ref.dtype)


# ---------------------------- parameter packing ------------------------------
def pack_params(params):
    """One-time packing/casting of parameters. Call ONCE and reuse the result;
    do not rebuild per forward call."""
    return {
        "w1": params["w1"].astype(jnp.bfloat16),                         # (IN_DIM, h1)
        "p1": jnp.concatenate((params["b1"], params["g1"], params["be1"]),
                              axis=0),                                   # (3, h1) f32
        "w2": params["w2"].astype(jnp.bfloat16),                         # (h1, h2)
        "p2": jnp.concatenate((params["b2"], params["g2"], params["be2"]),
                              axis=0),                                   # (3, h2) f32
        "w3": params["w3"].astype(jnp.bfloat16),                         # (h2, REW_DIM)
        "b3": params["b3"],                                              # (1, REW_DIM) f32
    }


# ------------------------------ wrapper --------------------------------------
def _pick_batch_tile(B, max_batch_tile):
    # Largest multiple of 8 that divides B and is <= max_batch_tile.
    # Small/medium batches run as a single grid step (no benefit from extra
    # serial steps on 1-TC chips); large batches naturally get >= 2 steps for
    # v7x megacore sharding via the "parallel" dimension semantic.
    t = min(max_batch_tile, B)
    t -= t % 8
    while t > 8 and B % t != 0:
        t -= 8
    return t


def qnetwork_forward(obs, action, w, packed, *, max_batch_tile=1024):
    """Fused MLP forward. obs/action/w: (B, .) f32; packed = pack_params(...).
    Returns (B, REW_DIM) f32."""
    B = obs.shape[0]
    h1, h2 = NET_ARCH
    assert obs.shape == (B, OBS_DIM)
    assert action.shape == (B, ACTION_DIM)
    assert w.shape == (B, REW_DIM)
    assert B % 8 == 0

    batch_tile = _pick_batch_tile(B, max_batch_tile)
    grid = (B // batch_tile,)

    # Single concatenated activation (104 B/row in f32, halved by the bf16
    # cast) -> one MXU pass for layer 1 instead of three narrow dots.
    x = jnp.concatenate((obs, action, w), axis=-1).astype(jnp.bfloat16)

    full = lambda shape: pl.BlockSpec(shape, lambda i: (0, 0))

    q = pl.pallas_call(
        qnetwork_kernel,
        out_shape=jax.ShapeDtypeStruct((B, REW_DIM), jnp.float32),
        grid_spec=pltpu.PrefetchScalarGridSpec(
            num_scalar_prefetch=0,
            grid=grid,
            in_specs=[
                pl.BlockSpec((batch_tile, IN_DIM), lambda i: (i, 0)),   # x
                full((IN_DIM, h1)), full((3, h1)),                      # w1, b1/g1/be1
                full((h1, h2)), full((3, h2)),                          # w2, b2/g2/be2
                full((h2, REW_DIM)), full((1, REW_DIM)),                # w3, b3
            ],
            out_specs=pl.BlockSpec((batch_tile, REW_DIM), lambda i: (i, 0)),
        ),
        compiler_params=pltpu.CompilerParams(
            dimension_semantics=("parallel",)),
    )(x, packed["w1"], packed["p1"], packed["w2"], packed["p2"],
      packed["w3"], packed["b3"])
    return q


# --------------------------- pure-JAX reference ------------------------------
def qnetwork_ref(obs, action, w, p):
    x = jnp.concatenate((obs, action, w), axis=-1)

    def ln(h, g, b):
        mu = jnp.mean(h, axis=-1, keepdims=True)
        var = jnp.mean(jnp.square(h - mu), axis=-1, keepdims=True)
        return (h - mu) * jax.lax.rsqrt(var + LN_EPS) * g + b

    h = x @ p["w1"] + p["b1"]
    h = jnp.maximum(ln(h, p["g1"], p["be1"]), 0.0)
    h = h @ p["w2"] + p["b2"]
    h = jnp.maximum(ln(h, p["g2"], p["be2"]), 0.0)
    return h @ p["w3"] + p["b3"]


# -------------------------- deterministic params -----------------------------
def init_params(key):
    """Deterministic synthetic init (stands in for layer_init orthogonal)."""
    h1, h2 = NET_ARCH
    ks = jax.random.split(key, 3)

    def linear(k, fan_in, fan_out):
        wm = jax.random.normal(k, (fan_in, fan_out), jnp.float32) / jnp.sqrt(fan_in)
        b = jnp.zeros((1, fan_out), jnp.float32)               # bias_const = 0
        return wm, b

    w1, b1 = linear(ks[0], IN_DIM, h1)
    w2, b2 = linear(ks[1], h1, h2)
    w3, b3 = linear(ks[2], h2, REW_DIM)
    return {
        "w1": w1, "b1": b1,
        "g1": jnp.ones((1, h1), jnp.float32), "be1": jnp.zeros((1, h1), jnp.float32),
        "w2": w2, "b2": b2,
        "g2": jnp.ones((1, h2), jnp.float32), "be2": jnp.zeros((1, h2), jnp.float32),
        "w3": w3, "b3": b3,
    }


# ---------------------------------- main --------------------------------------
if __name__ == "__main__":
    key = jax.random.PRNGKey(0)
    k_obs, k_act, k_w, k_par = jax.random.split(key, 4)

    B = 64
    obs = jax.random.normal(k_obs, (B, OBS_DIM), jnp.float32)
    action = jax.random.normal(k_act, (B, ACTION_DIM), jnp.float32)
    w_pref = jax.random.uniform(k_w, (B, REW_DIM), jnp.float32)
    w_pref = w_pref / jnp.sum(w_pref, axis=-1, keepdims=True)   # weight simplex

    params = init_params(k_par)
    packed = pack_params(params)          # one-time pack; reuse across calls

    q = qnetwork_forward(obs, action, w_pref, packed)
    q = jax.block_until_ready(q)

    q_ref = qnetwork_ref(obs, action, w_pref, params)
    assert q.shape == (B, REW_DIM)
    max_err = jnp.max(jnp.abs(q - q_ref))
    # Tolerance loosened vs the all-f32 version to account for bf16 MXU
    # operands (accumulation stays f32).
    assert jnp.allclose(q, q_ref, atol=5e-2, rtol=5e-2), (
        f"max abs err = {max_err}")

    print("KERNEL_OK")
</pallas_src>

<mosaic_0001>
module attributes {stable_mosaic.version = 11 : i64} {
  func.func @qnetwork_kernel(%arg0: i32, %arg1: memref<64x26xbf16, #tpu.memory_space<vmem>>, %arg2: memref<26x256xbf16, #tpu.memory_space<vmem>>, %arg3: memref<3x256xf32, #tpu.memory_space<vmem>>, %arg4: memref<256x256xbf16, #tpu.memory_space<vmem>>, %arg5: memref<3x256xf32, #tpu.memory_space<vmem>>, %arg6: memref<256x3xbf16, #tpu.memory_space<vmem>>, %arg7: memref<1x3xf32, #tpu.memory_space<vmem>>, %arg8: memref<64x3xf32, #tpu.memory_space<vmem>>) attributes {dimension_semantics = [#tpu.dimension_semantics<parallel>], iteration_bounds = array<i64: 1>, scalar_prefetch = 0 : i64, scratch_operands = 0 : i64, tpu.core_type = #tpu.core_type<tc>, window_params = [{transform_indices = @transform_0, window_bounds = array<i64: 64, 26>}, {pipeline_mode = #tpu.pipeline_mode<synchronous>, transform_indices = @transform_1, window_bounds = array<i64: 26, 256>}, {pipeline_mode = #tpu.pipeline_mode<synchronous>, transform_indices = @transform_2, window_bounds = array<i64: 3, 256>}, {pipeline_mode = #tpu.pipeline_mode<synchronous>, transform_indices = @transform_3, window_bounds = array<i64: 256, 256>}, {pipeline_mode = #tpu.pipeline_mode<synchronous>, transform_indices = @transform_4, window_bounds = array<i64: 3, 256>}, {pipeline_mode = #tpu.pipeline_mode<synchronous>, transform_indices = @transform_5, window_bounds = array<i64: 256, 3>}, {pipeline_mode = #tpu.pipeline_mode<synchronous>, transform_indices = @transform_6, window_bounds = array<i64: 1, 3>}, {transform_indices = @transform_7, window_bounds = array<i64: 64, 3>}]} {
    %c0 = arith.constant 0 : index
    %c0_0 = arith.constant 0 : index
    %0 = vector.load %arg1[%c0, %c0_0] : memref<64x26xbf16, #tpu.memory_space<vmem>>, vector<64x26xbf16>
    %c0_1 = arith.constant 0 : index
    %c0_2 = arith.constant 0 : index
    %1 = vector.load %arg2[%c0_1, %c0_2] : memref<26x256xbf16, #tpu.memory_space<vmem>>, vector<26x256xbf16>
    %cst = arith.constant dense<0.000000e+00> : vector<64x256xf32>
    %2 = tpu.matmul %0, %1, %cst {dimension_numbers = #tpu.dot_dimension_numbers<[1], [0], [0], [1], [0, 0, 1, 1], [], []>} : vector<64x26xbf16>, vector<26x256xbf16>, vector<64x256xf32> -> vector<64x256xf32>
    %c0_3 = arith.constant 0 : index
    %c0_4 = arith.constant 0 : index
    %3 = vector.load %arg3[%c0_3, %c0_4] : memref<3x256xf32, #tpu.memory_space<vmem>>, vector<1x256xf32>
    %4 = vector.broadcast %3 : vector<1x256xf32> to vector<64x256xf32>
    %5 = arith.addf %2, %4 : vector<64x256xf32>
    %c1 = arith.constant 1 : index
    %c0_5 = arith.constant 0 : index
    %6 = vector.load %arg3[%c1, %c0_5] : memref<3x256xf32, #tpu.memory_space<vmem>>, vector<1x256xf32>
    %c2 = arith.constant 2 : index
    %c0_6 = arith.constant 0 : index
    %7 = vector.load %arg3[%c2, %c0_6] : memref<3x256xf32, #tpu.memory_space<vmem>>, vector<1x256xf32>
    %cst_7 = arith.constant dense<0.000000e+00> : vector<64xf32>
    %8 = vector.multi_reduction <add>, %5, %cst_7 [1] : vector<64x256xf32> to vector<64xf32>
    %9 = vector.shape_cast %8 : vector<64xf32> to vector<64x1xf32>
    %cst_8 = arith.constant 2.560000e+02 : f32
    %10 = vector.broadcast %cst_8 : f32 to vector<64x1xf32>
    %11 = arith.divf %9, %10 : vector<64x1xf32>
    %12 = vector.broadcast %11 : vector<64x1xf32> to vector<64x256xf32>
    %13 = arith.subf %5, %12 : vector<64x256xf32>
    %14 = arith.mulf %13, %13 : vector<64x256xf32>
    %cst_9 = arith.constant dense<0.000000e+00> : vector<64xf32>
    %15 = vector.multi_reduction <add>, %14, %cst_9 [1] : vector<64x256xf32> to vector<64xf32>
    %16 = vector.shape_cast %15 : vector<64xf32> to vector<64x1xf32>
    %cst_10 = arith.constant 2.560000e+02 : f32
    %17 = vector.broadcast %cst_10 : f32 to vector<64x1xf32>
    %18 = arith.divf %16, %17 : vector<64x1xf32>
    %19 = vector.broadcast %11 : vector<64x1xf32> to vector<64x256xf32>
    %20 = arith.subf %5, %19 : vector<64x256xf32>
    %cst_11 = arith.constant 9.99999974E-6 : f32
    %21 = vector.broadcast %cst_11 : f32 to vector<64x1xf32>
    %22 = arith.addf %18, %21 : vector<64x1xf32>
    %23 = math.rsqrt %22 : vector<64x1xf32>
    %24 = vector.broadcast %23 : vector<64x1xf32> to vector<64x256xf32>
    %25 = arith.mulf %20, %24 : vector<64x256xf32>
    %26 = vector.broadcast %6 : vector<1x256xf32> to vector<64x256xf32>
    %27 = arith.mulf %25, %26 : vector<64x256xf32>
    %28 = vector.broadcast %7 : vector<1x256xf32> to vector<64x256xf32>
    %29 = arith.addf %27, %28 : vector<64x256xf32>
    %cst_12 = arith.constant 0.000000e+00 : f32
    %30 = vector.broadcast %cst_12 : f32 to vector<64x256xf32>
    %31 = arith.maximumf %29, %30 : vector<64x256xf32>
    %32 = arith.truncf %31 : vector<64x256xf32> to vector<64x256xbf16>
    %c0_13 = arith.constant 0 : index
    %c0_14 = arith.constant 0 : index
    %33 = vector.load %arg4[%c0_13, %c0_14] : memref<256x256xbf16, #tpu.memory_space<vmem>>, vector<256x256xbf16>
    %cst_15 = arith.constant dense<0.000000e+00> : vector<64x256xf32>
    %34 = tpu.matmul %32, %33, %cst_15 {dimension_numbers = #tpu.dot_dimension_numbers<[1], [0], [0], [1], [0, 0, 1, 1], [], []>} : vector<64x256xbf16>, vector<256x256xbf16>, vector<64x256xf32> -> vector<64x256xf32>
    %c0_16 = arith.constant 0 : index
    %c0_17 = arith.constant 0 : index
    %35 = vector.load %arg5[%c0_16, %c0_17] : memref<3x256xf32, #tpu.memory_space<vmem>>, vector<1x256xf32>
    %36 = vector.broadcast %35 : vector<1x256xf32> to vector<64x256xf32>
    %37 = arith.addf %34, %36 : vector<64x256xf32>
    %c1_18 = arith.constant 1 : index
    %c0_19 = arith.constant 0 : index
    %38 = vector.load %arg5[%c1_18, %c0_19] : memref<3x256xf32, #tpu.memory_space<vmem>>, vector<1x256xf32>
    %c2_20 = arith.constant 2 : index
    %c0_21 = arith.constant 0 : index
    %39 = vector.load %arg5[%c2_20, %c0_21] : memref<3x256xf32, #tpu.memory_space<vmem>>, vector<1x256xf32>
    %cst_22 = arith.constant dense<0.000000e+00> : vector<64xf32>
    %40 = vector.multi_reduction <add>, %37, %cst_22 [1] : vector<64x256xf32> to vector<64xf32>
    %41 = vector.shape_cast %40 : vector<64xf32> to vector<64x1xf32>
    %cst_23 = arith.constant 2.560000e+02 : f32
    %42 = vector.broadcast %cst_23 : f32 to vector<64x1xf32>
    %43 = arith.divf %41, %42 : vector<64x1xf32>
    %44 = vector.broadcast %43 : vector<64x1xf32> to vector<64x256xf32>
    %45 = arith.subf %37, %44 : vector<64x256xf32>
    %46 = arith.mulf %45, %45 : vector<64x256xf32>
    %cst_24 = arith.constant dense<0.000000e+00> : vector<64xf32>
    %47 = vector.multi_reduction <add>, %46, %cst_24 [1] : vector<64x256xf32> to vector<64xf32>
    %48 = vector.shape_cast %47 : vector<64xf32> to vector<64x1xf32>
    %cst_25 = arith.constant 2.560000e+02 : f32
    %49 = vector.broadcast %cst_25 : f32 to vector<64x1xf32>
    %50 = arith.divf %48, %49 : vector<64x1xf32>
    %51 = vector.broadcast %43 : vector<64x1xf32> to vector<64x256xf32>
    %52 = arith.subf %37, %51 : vector<64x256xf32>
    %cst_26 = arith.constant 9.99999974E-6 : f32
    %53 = vector.broadcast %cst_26 : f32 to vector<64x1xf32>
    %54 = arith.addf %50, %53 : vector<64x1xf32>
    %55 = math.rsqrt %54 : vector<64x1xf32>
    %56 = vector.broadcast %55 : vector<64x1xf32> to vector<64x256xf32>
    %57 = arith.mulf %52, %56 : vector<64x256xf32>
    %58 = vector.broadcast %38 : vector<1x256xf32> to vector<64x256xf32>
    %59 = arith.mulf %57, %58 : vector<64x256xf32>
    %60 = vector.broadcast %39 : vector<1x256xf32> to vector<64x256xf32>
    %61 = arith.addf %59, %60 : vector<64x256xf32>
    %cst_27 = arith.constant 0.000000e+00 : f32
    %62 = vector.broadcast %cst_27 : f32 to vector<64x256xf32>
    %63 = arith.maximumf %61, %62 : vector<64x256xf32>
    %64 = arith.truncf %63 : vector<64x256xf32> to vector<64x256xbf16>
    %c0_28 = arith.constant 0 : index
    %c0_29 = arith.constant 0 : index
    %65 = vector.load %arg6[%c0_28, %c0_29] : memref<256x3xbf16, #tpu.memory_space<vmem>>, vector<256x3xbf16>
    %cst_30 = arith.constant dense<0.000000e+00> : vector<64x3xf32>
    %66 = tpu.matmul %64, %65, %cst_30 {dimension_numbers = #tpu.dot_dimension_numbers<[1], [0], [0], [1], [0, 0, 1, 1], [], []>} : vector<64x256xbf16>, vector<256x3xbf16>, vector<64x3xf32> -> vector<64x3xf32>
    %c0_31 = arith.constant 0 : index
    %c0_32 = arith.constant 0 : index
    %67 = vector.load %arg7[%c0_31, %c0_32] : memref<1x3xf32, #tpu.memory_space<vmem>>, vector<1x3xf32>
    %68 = vector.broadcast %67 : vector<1x3xf32> to vector<64x3xf32>
    %69 = arith.addf %66, %68 : vector<64x3xf32>
    %c0_33 = arith.constant 0 : index
    %c0_34 = arith.constant 0 : index
    %70 = vector.load %arg8[%c0_33, %c0_34] : memref<64x3xf32, #tpu.memory_space<vmem>>, vector<64x3xf32>
    tpu.vector_store %arg8[%c0_33, %c0_34], %69 {strides = array<i32>} : memref<64x3xf32, #tpu.memory_space<vmem>>, vector<64x3xf32>,
    return
  }
  func.func @transform_0(%arg0: i32) -> (i32, i32) {
    %c0_i32 = arith.constant 0 : i32
    %c0_i32_0 = arith.constant 0 : i32
    return %arg0, %c0_i32 : i32, i32
  }
  func.func @transform_1(%arg0: i32) -> (i32, i32) {
    %c0_i32 = arith.constant 0 : i32
    %c0_i32_0 = arith.constant 0 : i32
    %c0_i32_1 = arith.constant 0 : i32
    return %c0_i32, %c0_i32_0 : i32, i32
  }
  func.func @transform_2(%arg0: i32) -> (i32, i32) {
    %c0_i32 = arith.constant 0 : i32
    %c0_i32_0 = arith.constant 0 : i32
    %c0_i32_1 = arith.constant 0 : i32
    return %c0_i32, %c0_i32_0 : i32, i32
  }
  func.func @transform_3(%arg0: i32) -> (i32, i32) {
    %c0_i32 = arith.constant 0 : i32
    %c0_i32_0 = arith.constant 0 : i32
    %c0_i32_1 = arith.constant 0 : i32
    return %c0_i32, %c0_i32_0 : i32, i32
  }
  func.func @transform_4(%arg0: i32) -> (i32, i32) {
    %c0_i32 = arith.constant 0 : i32
    %c0_i32_0 = arith.constant 0 : i32
    %c0_i32_1 = arith.constant 0 : i32
    return %c0_i32, %c0_i32_0 : i32, i32
  }
  func.func @transform_5(%arg0: i32) -> (i32, i32) {
    %c0_i32 = arith.constant 0 : i32
    %c0_i32_0 = arith.constant 0 : i32
    %c0_i32_1 = arith.constant 0 : i32
    return %c0_i32, %c0_i32_0 : i32, i32
  }
  func.func @transform_6(%arg0: i32) -> (i32, i32) {
    %c0_i32 = arith.constant 0 : i32
    %c0_i32_0 = arith.constant 0 : i32
    %c0_i32_1 = arith.constant 0 : i32
    return %c0_i32, %c0_i32_0 : i32, i32
  }
  func.func @transform_7(%arg0: i32) -> (i32, i32) {
    %c0_i32 = arith.constant 0 : i32
    %c0_i32_0 = arith.constant 0 : i32
    return %arg0, %c0_i32 : i32, i32
  }
}

</mosaic_0001>

<llo_original>
// kernel: tpu_custom_call.1
$region0: #{tpu_custom_call.1}
  #allocation0 [shape = 'u32[]', space=smem, size = 0x4, offset = 0x4, fixed_abs, tag = 'smem constant byte address 0x4 - core index']
  #allocation1 [shape = 'u32[144,128]{1,0:T(1,128)}', space=vmem, size = 0x12000, scoped, tag = 'internal scratch']
  %s0 = inlined_call_operand.vmem [shape: bf16[64,26], index: 0, kind: input, shape index: {}]
  %s1 = inlined_call_operand.vmem [shape: bf16[26,256], index: 1, kind: input, shape index: {}]
  %s2 = inlined_call_operand.vmem [shape: f32[3,256], index: 2, kind: input, shape index: {}]
  %s3 = inlined_call_operand.hbm [shape: bf16[256,256], index: 3, kind: input, shape index: {}]
  %s4 = inlined_call_operand.vmem [shape: f32[3,256], index: 4, kind: input, shape index: {}]
  %s5 = inlined_call_operand.vmem [shape: bf16[256,3], index: 5, kind: input, shape index: {}]
  %s6 = inlined_call_operand.vmem [shape: f32[1,3], index: 6, kind: input, shape index: {}]
  %s7 = inlined_call_operand.vmem [shape: f32[64,3], index: 7, kind: output, shape index: {}]
  %s8 = sld [smem:[#allocation0]]
  $region42: #{tpu_custom_call.1} parent=0
    _
  %s10 = ssub.s32 1, %s8
  %s11 = scalar_select 0, %s10, %s8
  $region1: #{tpu_custom_call.1} parent=0
    #allocation2 [shape = 'u8[131072]{0}', space=vmem, size = 0x20000, scoped, tag = 'input window, operand 3, single buffered']
    #allocation3 [shape = 's32[1]{0}', space=sflag, size = 0x4, scoped, tag = 'scoped memory for tpu_custom_call.1']
    %12 = vsyncpa [#allocation3], 0
    // Predicated region
    $region2: #{tpu_custom_call.1} parent=1 // pred_check
      _
    $region3: #{tpu_custom_call.1} parent=1 // pred_check_branch
      %14 = sbr.rel (0) target = $region5
    $region4: #{tpu_custom_call.1} parent=1 // pred_region
      _
    $region5: #{tpu_custom_call.1} parent=1 // pred_fallthru
      _
    // Predicated region
    $region6: #{tpu_custom_call.1} parent=1 // pred_check
      _
    $region7: #{tpu_custom_call.1} parent=1 // pred_check_branch
      %16 = sbr.rel (0) target = $region9
    $region8: #{tpu_custom_call.1} parent=1 // pred_region
      _
    $region9: #{tpu_custom_call.1} parent=1 // pred_fallthru
      _
    // Predicated region
    $region10: #{tpu_custom_call.1} parent=1 // pred_check
      _
    $region11: #{tpu_custom_call.1} parent=1 // pred_check_branch
      %18 = sbr.rel (0) target = $region13
    $region12: #{tpu_custom_call.1} parent=1 // pred_region
      _
    $region13: #{tpu_custom_call.1} parent=1 // pred_fallthru
      _
    // Predicated region
    $region14: #{tpu_custom_call.1} parent=1 // pred_check
      _
    $region15: #{tpu_custom_call.1} parent=1 // pred_check_branch
      %20 = sbr.rel (0) target = $region17
    $region16: #{tpu_custom_call.1} parent=1 // pred_region
      %s22 = ssub.s32 4096, 4096
      %23 = vsyncadd [#allocation3], %s22
      %s24 = sshll.u32 [#allocation2], 4
      %s25 = int_to_ptr.vmem [resolvable:$true] %s24
      %30 = dma.hbm_to_vmem [thread:$0]  %s3, 4096, %s25, [#allocation3], 128, 128, 8
    $region17: #{tpu_custom_call.1} parent=1 // pred_fallthru
      _
    // Predicated region
    $region18: #{tpu_custom_call.1} parent=1 // pred_check
      _
    $region19: #{tpu_custom_call.1} parent=1 // pred_check_branch
      %32 = sbr.rel (0) target = $region21
    $region20: #{tpu_custom_call.1} parent=1 // pred_region
      _
    $region21: #{tpu_custom_call.1} parent=1 // pred_fallthru
      _
    // Predicated region
    $region22: #{tpu_custom_call.1} parent=1 // pred_check
      _
    $region23: #{tpu_custom_call.1} parent=1 // pred_check_branch
      %34 = sbr.rel (0) target = $region25
    $region24: #{tpu_custom_call.1} parent=1 // pred_region
      _
    $region25: #{tpu_custom_call.1} parent=1 // pred_fallthru
      _
    // Predicated region
    $region26: #{tpu_custom_call.1} parent=1 // pred_check
      _
    $region27: #{tpu_custom_call.1} parent=1 // pred_check_branch
      %36 = sbr.rel (0) target = $region29
    $region28: #{tpu_custom_call.1} parent=1 // pred_region
      _
    $region29: #{tpu_custom_call.1} parent=1 // pred_fallthru
      _
    // Predicated region
    $region30: #{tpu_custom_call.1} parent=1 // pred_check
      _
    $region31: #{tpu_custom_call.1} parent=1 // pred_check_branch
      %38 = sbr.rel (0) target = $region33
    $region32: #{tpu_custom_call.1} parent=1 // pred_region
      %39 = dma.done [#allocation3], 4096
    $region33: #{tpu_custom_call.1} parent=1 // pred_fallthru
      _
    %v41 = vld [vmem:[%s0] sm:$0xf]
    %v42 = vld [vmem:[%s0 + $0x4] sm:$0xf]
    %v43 = vld [vmem:[%s0 + $0x8] sm:$0xf]
    %v44 = vld [vmem:[%s0 + $0xc] sm:$0xf]
    %v45 = vld [vmem:[%s0 + $0x10] sm:$0xf]
    %v46 = vld [vmem:[%s0 + $0x14] sm:$0xf]
    %v47 = vld [vmem:[%s0 + $0x18] sm:$0xf]
    %v48 = vld [vmem:[%s0 + $0x1c] sm:$0xf]
    %v49 = vld [vmem:[%s1] sm:$0xff]
    %v50 = vld [vmem:[%s1 + $0x8] sm:$0xff]
    %v51 = vld [vmem:[%s1 + $0x10] sm:$0xff]
    %v52 = vld [vmem:[%s1 + $0x18] sm:$0x11]
    %v53 = vld [vmem:[%s2] ss:$4 sm:$0x3]
    %v55 = vlaneseq
    %v56 = vshrl.u32 %v55, 7
    %v57 = vsub.s32 0, %v56
    %v58 = vrot.slane %v53, %v57
    %v59 = vlaneseq
    %v60 = vshrl.u32 %v59, 7
    %v61 = vsub.s32 1, %v60
    %v62 = vrot.slane %v53, %v61
    %v73 = vunpack.c.l.b16 %v41
    %v74 = vunpack.c.l.b16 %v42
    %v75 = vunpack.c.l.b16 %v43
    %v76 = vunpack.c.l.b16 %v44
    %v77 = vunpack.c.l.b16 %v45
    %v78 = vunpack.c.l.b16 %v46
    %v79 = vunpack.c.l.b16 %v47
    %v80 = vunpack.c.l.b16 %v48
    %v81 = vpack.c.b16 %v74, %v73
    %v82 = vpack.c.b16 %v76, %v75
    %v83 = vpack.c.b16 %v78, %v77
    %v84 = vpack.c.b16 %v80, %v79
    %v89 = vunpack.c.l.b16 %v49
    %v90 = vunpack.c.h.b16 %v49
    %v91 = vunpack.c.l.b16 %v50
    %v92 = vunpack.c.h.b16 %v50
    %v93 = vunpack.c.l.b16 %v51
    %v94 = vunpack.c.h.b16 %v51
    %v95 = vunpack.c.l.b16 %v52
    %v96 = vunpack.c.h.b16 %v52
    %v97 = vpack.c.b16 %v91, %v89
    %v98 = vpack.c.b16 %v92, %v90
    %v99 = vpack.c.b16 %v95, %v93
    %v100 = vpack.c.b16 %v96, %v94
    %vm103 = vcmask 211968
    %v105 = vsel %vm103, %v81, 0
    %v108 = vsel %vm103, %v82, 0
    %v111 = vsel %vm103, %v83, 0
    %v114 = vsel %vm103, %v84, 0
    %vm116 = vcmask 1044480
    %v118 = vsel %vm116, %v99, 0
    %v121 = vsel %vm116, %v100, 0
    %123 = vmatprep.subr.bf16.mxu0 0
    %124 = vmatpush1.bf16.msra.mxu0 0
    %125 = vmatprep.subr.bf16.mxu0 0
    %126 = vmatpush1.bf16.msra.mxu0 0
    %127 = vmatprep.subr.bf16.mxu0 0
    %128 = vmatpush1.bf16.msra.mxu0 0
    %129 = vmatprep.subr.bf16.mxu0 0
    %130 = vmatpush1.bf16.msra.mxu0 0
    %131 = vmatprep.subr.bf16.mxu0 0
    %132 = vmatpush1.bf16.msra.mxu0 0
    %133 = vmatprep.subr.bf16.mxu0 0
    %134 = vmatpush1.bf16.msra.mxu0 0
    %135 = vmatprep.subr.bf16.mxu0 %v121
    %136 = vmatpush1.bf16.msra.mxu0 %v118
    %137 = vmatprep.subr.bf16.mxu0 %v98
    %138 = vmatpush1.bf16.msra.mxu0 %v97
    %139 = vmatprep.subr.bf16.mxu0 0
    %140 = vmatpush2.bf16.msra.mxu0 0
    %141 = vmatprep.subr.bf16.mxu0 0
    %142 = vmatpush2.bf16.msra.mxu0 0
    %143 = vmatprep.subr.bf16.mxu0 0
    %144 = vmatpush2.bf16.msra.mxu0 0
    %145 = vmatprep.subr.bf16.mxu0 0
    %146 = vmatpush2.bf16.msra.mxu0 0
    %147 = vmatprep.subr.bf16.mxu0 0
    %148 = vmatpush2.bf16.msra.mxu0 0
    %149 = vmatprep.subr.bf16.mxu0 0
    %150 = vmatpush2.bf16.msra.mxu0 0
    %151 = vmatprep.subr.bf16.mxu0 0
    %152 = vmatpush2.bf16.msra.mxu0 0
    %153 = vmatprep.subr.bf16.mxu0 0
    %154 = vmatpush2.bf16.msra.mxu0 0
    %155 = vmatprep.mubr.bf16.mxu0 0
    %156 = vmatmul.mubr.bf16.gmra.mxu0 %v105
    %v157 = vpop.f32.mrf.mxu0
    %v158 = vadd.f32 %v58, %v157
    %v159 = vpop.f32.mrf.mxu0
    %v160 = vadd.f32 %v62, %v159
    %v161 = vpop.f32.mrf.mxu0
    %v162 = vadd.f32 %v58, %v161
    %v163 = vpop.f32.mrf.mxu0
    %v164 = vadd.f32 %v62, %v163
    %165 = vmatprep.mubr.bf16.mxu0 0
    %166 = vmatmul.mubr.bf16.gmra.mxu0 %v108
    %v167 = vpop.f32.mrf.mxu0
    %v168 = vadd.f32 %v58, %v167
    %v169 = vpop.f32.mrf.mxu0
    %v170 = vadd.f32 %v62, %v169
    %v171 = vpop.f32.mrf.mxu0
    %v172 = vadd.f32 %v58, %v171
    %v173 = vpop.f32.mrf.mxu0
    %v174 = vadd.f32 %v62, %v173
    %175 = vmatprep.mubr.bf16.mxu0 0
    %176 = vmatmul.mubr.bf16.gmra.mxu0 %v111
    %v177 = vpop.f32.mrf.mxu0
    %v178 = vadd.f32 %v58, %v177
    %v179 = vpop.f32.mrf.mxu0
    %v180 = vadd.f32 %v62, %v179
    %v181 = vpop.f32.mrf.mxu0
    %v182 = vadd.f32 %v58, %v181
    %v183 = vpop.f32.mrf.mxu0
    %v184 = vadd.f32 %v62, %v183
    %185 = vmatprep.mubr.bf16.mxu0 0
    %186 = vmatmul.mubr.bf16.gmra.mxu0 %v114
    %v187 = vpop.f32.mrf.mxu0
    %v188 = vadd.f32 %v58, %v187
    %v189 = vpop.f32.mrf.mxu0
    %v190 = vadd.f32 %v62, %v189
    %v191 = vpop.f32.mrf.mxu0
    %v192 = vadd.f32 %v58, %v191
    %v193 = vpop.f32.mrf.mxu0
    %v194 = vadd.f32 %v62, %v193
    %195 = vdwg.mxu0
    %s196 = scalar_lea.vmem %s2, 1
    %v197 = vld [vmem:[%s196] ss:$4 sm:$0x3]
    %s198 = scalar_lea.vmem %s2, 2
    %v199 = vld [vmem:[%s198] ss:$4 sm:$0x3]
    %v200 = vadd.f32 %v158, %v160
    %201 = vadd.xlane.f32.xlu0 %v200
    %v202 = vpop.xlane.xlu0 %201
    %v203 = vadd.f32 %v162, %v164
    %204 = vadd.xlane.f32.xlu0 %v203
    %v205 = vpop.xlane.xlu0 %204
    %v206 = vadd.f32 %v168, %v170
    %207 = vadd.xlane.f32.xlu0 %v206
    %v208 = vpop.xlane.xlu0 %207
    %v209 = vadd.f32 %v172, %v174
    %210 = vadd.xlane.f32.xlu0 %v209
    %v211 = vpop.xlane.xlu0 %210
    %v212 = vadd.f32 %v178, %v180
    %213 = vadd.xlane.f32.xlu0 %v212
    %v214 = vpop.xlane.xlu0 %213
    %v215 = vadd.f32 %v182, %v184
    %216 = vadd.xlane.f32.xlu0 %v215
    %v217 = vpop.xlane.xlu0 %216
    %v218 = vadd.f32 %v188, %v190
    %219 = vadd.xlane.f32.xlu0 %v218
    %v220 = vpop.xlane.xlu0 %219
    %v221 = vadd.f32 %v192, %v194
    %222 = vadd.xlane.f32.xlu0 %v221
    %v223 = vpop.xlane.xlu0 %222
    %v224 = vrcp.pop 256.0
    %v225 = vmul.f32 %v202, %v224
    %v226 = vmul.f32 %v205, %v224
    %v227 = vmul.f32 %v208, %v224
    %v228 = vmul.f32 %v211, %v224
    %v229 = vmul.f32 %v214, %v224
    %v230 = vmul.f32 %v217, %v224
    %v231 = vmul.f32 %v220, %v224
    %v232 = vmul.f32 %v223, %v224
    %v233 = vsub.f32 %v158, %v225
    %v234 = vsub.f32 %v160, %v225
    %v235 = vsub.f32 %v162, %v226
    %v236 = vsub.f32 %v164, %v226
    %v237 = vsub.f32 %v168, %v227
    %v238 = vsub.f32 %v170, %v227
    %v239 = vsub.f32 %v172, %v228
    %v240 = vsub.f32 %v174, %v228
    %v241 = vsub.f32 %v178, %v229
    %v242 = vsub.f32 %v180, %v229
    %v243 = vsub.f32 %v182, %v230
    %v244 = vsub.f32 %v184, %v230
    %v245 = vsub.f32 %v188, %v231
    %v246 = vsub.f32 %v190, %v231
    %v247 = vsub.f32 %v192, %v232
    %v248 = vsub.f32 %v194, %v232
    %v249 = vmul.f32 %v233, %v233
    %v250 = vmul.f32 %v234, %v234
    %v251 = vmul.f32 %v235, %v235
    %v252 = vmul.f32 %v236, %v236
    %v253 = vmul.f32 %v237, %v237
    %v254 = vmul.f32 %v238, %v238
    %v255 = vmul.f32 %v239, %v239
    %v256 = vmul.f32 %v240, %v240
    %v257 = vmul.f32 %v241, %v241
    %v258 = vmul.f32 %v242, %v242
    %v259 = vmul.f32 %v243, %v243
    %v260 = vmul.f32 %v244, %v244
    %v261 = vmul.f32 %v245, %v245
    %v262 = vmul.f32 %v246, %v246
    %v263 = vmul.f32 %v247, %v247
    %v264 = vmul.f32 %v248, %v248
    %v265 = vadd.f32 %v249, %v250
    %266 = vadd.xlane.f32.xlu0 %v265
    %v267 = vpop.xlane.xlu0 %266
    %v268 = vadd.f32 %v251, %v252
    %269 = vadd.xlane.f32.xlu0 %v268
    %v270 = vpop.xlane.xlu0 %269
    %v271 = vadd.f32 %v253, %v254
    %272 = vadd.xlane.f32.xlu0 %v271
    %v273 = vpop.xlane.xlu0 %272
    %v274 = vadd.f32 %v255, %v256
    %275 = vadd.xlane.f32.xlu0 %v274
    %v276 = vpop.xlane.xlu0 %275
    %v277 = vadd.f32 %v257, %v258
    %278 = vadd.xlane.f32.xlu0 %v277
    %v279 = vpop.xlane.xlu0 %278
    %v280 = vadd.f32 %v259, %v260
    %281 = vadd.xlane.f32.xlu0 %v280
    %v282 = vpop.xlane.xlu0 %281
    %v283 = vadd.f32 %v261, %v262
    %284 = vadd.xlane.f32.xlu0 %v283
    %v285 = vpop.xlane.xlu0 %284
    %v286 = vadd.f32 %v263, %v264
    %287 = vadd.xlane.f32.xlu0 %v286
    %v288 = vpop.xlane.xlu0 %287
    %v289 = vmul.f32 %v267, %v224
    %v290 = vmul.f32 %v270, %v224
    %v291 = vmul.f32 %v273, %v224
    %v292 = vmul.f32 %v276, %v224
    %v293 = vmul.f32 %v279, %v224
    %v294 = vmul.f32 %v282, %v224
    %v295 = vmul.f32 %v285, %v224
    %v296 = vmul.f32 %v288, %v224
    %v297 = vadd.f32 %v289, 1e-05
    %v298 = vadd.f32 %v290, 1e-05
    %v299 = vadd.f32 %v291, 1e-05
    %v300 = vadd.f32 %v292, 1e-05
    %v301 = vadd.f32 %v293, 1e-05
    %v302 = vadd.f32 %v294, 1e-05
    %v303 = vadd.f32 %v295, 1e-05
    %v304 = vadd.f32 %v296, 1e-05
    %v305 = vrsqrt.pop %v297
    %v306 = vrsqrt.pop %v298
    %v307 = vrsqrt.pop %v299
    %v308 = vrsqrt.pop %v300
    %v309 = vrsqrt.pop %v301
    %v310 = vrsqrt.pop %v302
    %v311 = vrsqrt.pop %v303
    %v312 = vrsqrt.pop %v304
    %v313 = vmul.f32 %v233, %v305
    %v314 = vmul.f32 %v234, %v305
    %v315 = vmul.f32 %v235, %v306
    %v316 = vmul.f32 %v236, %v306
    %v317 = vmul.f32 %v237, %v307
    %v318 = vmul.f32 %v238, %v307
    %v319 = vmul.f32 %v239, %v308
    %v320 = vmul.f32 %v240, %v308
    %v321 = vmul.f32 %v241, %v309
    %v322 = vmul.f32 %v242, %v309
    %v323 = vmul.f32 %v243, %v310
    %v324 = vmul.f32 %v244, %v310
    %v325 = vmul.f32 %v245, %v311
    %v326 = vmul.f32 %v246, %v311
    %v327 = vmul.f32 %v247, %v312
    %v328 = vmul.f32 %v248, %v312
    %v330 = vlaneseq
    %v331 = vshrl.u32 %v330, 7
    %v332 = vsub.s32 0, %v331
    %v333 = vrot.slane %v197, %v332
    %v334 = vlaneseq
    %v335 = vshrl.u32 %v334, 7
    %v336 = vsub.s32 1, %v335
    %v337 = vrot.slane %v197, %v336
    %v340 = vmul.f32 %v313, %v333
    %v341 = vmul.f32 %v314, %v337
    %v342 = vmul.f32 %v315, %v333
    %v343 = vmul.f32 %v316, %v337
    %v344 = vmul.f32 %v317, %v333
    %v345 = vmul.f32 %v318, %v337
    %v346 = vmul.f32 %v319, %v333
    %v347 = vmul.f32 %v320, %v337
    %v348 = vmul.f32 %v321, %v333
    %v349 = vmul.f32 %v322, %v337
    %v350 = vmul.f32 %v323, %v333
    %v351 = vmul.f32 %v324, %v337
    %v352 = vmul.f32 %v325, %v333
    %v353 = vmul.f32 %v326, %v337
    %v354 = vmul.f32 %v327, %v333
    %v355 = vmul.f32 %v328, %v337
    %v357 = vlaneseq
    %v358 = vshrl.u32 %v357, 7
    %v359 = vsub.s32 0, %v358
    %v360 = vrot.slane %v199, %v359
    %v361 = vlaneseq
    %v362 = vshrl.u32 %v361, 7
    %v363 = vsub.s32 1, %v362
    %v364 = vrot.slane %v199, %v363
    %v367 = vadd.f32 %v340, %v360
    %v368 = vadd.f32 %v341, %v364
    %v369 = vadd.f32 %v342, %v360
    %v370 = vadd.f32 %v343, %v364
    %v371 = vadd.f32 %v344, %v360
    %v372 = vadd.f32 %v345, %v364
    %v373 = vadd.f32 %v346, %v360
    %v374 = vadd.f32 %v347, %v364
    %v375 = vadd.f32 %v348, %v360
    %v376 = vadd.f32 %v349, %v364
    %v377 = vadd.f32 %v350, %v360
    %v378 = vadd.f32 %v351, %v364
    %v379 = vadd.f32 %v352, %v360
    %v380 = vadd.f32 %v353, %v364
    %v381 = vadd.f32 %v354, %v360
    %v382 = vadd.f32 %v355, %v364
    %v383 = vmax.f32 %v367, 0.0
    %v384 = vmax.f32 %v368, 0.0
    %v385 = vmax.f32 %v369, 0.0
    %v386 = vmax.f32 %v370, 0.0
    %v387 = vmax.f32 %v371, 0.0
    %v388 = vmax.f32 %v372, 0.0
    %v389 = vmax.f32 %v373, 0.0
    %v390 = vmax.f32 %v374, 0.0
    %v391 = vmax.f32 %v375, 0.0
    %v392 = vmax.f32 %v376, 0.0
    %v393 = vmax.f32 %v377, 0.0
    %v394 = vmax.f32 %v378, 0.0
    %v395 = vmax.f32 %v379, 0.0
    %v396 = vmax.f32 %v380, 0.0
    %v397 = vmax.f32 %v381, 0.0
    %v398 = vmax.f32 %v382, 0.0
    %v399 = vpack.c.bf16 %v385, %v383
    %v400 = vpack.c.bf16 %v386, %v384
    %v401 = vpack.c.bf16 %v389, %v387
    %v402 = vpack.c.bf16 %v390, %v388
    %v403 = vpack.c.bf16 %v393, %v391
    %v404 = vpack.c.bf16 %v394, %v392
    %v405 = vpack.c.bf16 %v397, %v395
    %v406 = vpack.c.bf16 %v398, %v396
    %v407 = vld [vmem:[#allocation2] sm:$0xff]
    %v408 = vld [vmem:[#allocation2 + $0x8] sm:$0xff]
    %v409 = vld [vmem:[#allocation2 + $0x10] sm:$0xff]
    %v410 = vld [vmem:[#allocation2 + $0x18] sm:$0xff]
    %v411 = vld [vmem:[#allocation2 + $0x20] sm:$0xff]
    %v412 = vld [vmem:[#allocation2 + $0x28] sm:$0xff]
    %v413 = vld [vmem:[#allocation2 + $0x30] sm:$0xff]
    %v414 = vld [vmem:[#allocation2 + $0x38] sm:$0xff]
    %v415 = vld [vmem:[#allocation2 + $0x40] sm:$0xff]
    %v416 = vld [vmem:[#allocation2 + $0x48] sm:$0xff]
    %v417 = vld [vmem:[#allocation2 + $0x50] sm:$0xff]
    %v418 = vld [vmem:[#allocation2 + $0x58] sm:$0xff]
    %v419 = vld [vmem:[#allocation2 + $0x60] sm:$0xff]
    %v420 = vld [vmem:[#allocation2 + $0x68] sm:$0xff]
    %v421 = vld [vmem:[#allocation2 + $0x70] sm:$0xff]
    %v422 = vld [vmem:[#allocation2 + $0x78] sm:$0xff]
    %v423 = vld [vmem:[#allocation2 + $0x80] sm:$0xff]
    %v424 = vld [vmem:[#allocation2 + $0x88] sm:$0xff]
    %v425 = vld [vmem:[#allocation2 + $0x90] sm:$0xff]
    %v426 = vld [vmem:[#allocation2 + $0x98] sm:$0xff]
    %v427 = vld [vmem:[#allocation2 + $0xa0] sm:$0xff]
    %v428 = vld [vmem:[#allocation2 + $0xa8] sm:$0xff]
    %v429 = vld [vmem:[#allocation2 + $0xb0] sm:$0xff]
    %v430 = vld [vmem:[#allocation2 + $0xb8] sm:$0xff]
    %v431 = vld [vmem:[#allocation2 + $0xc0] sm:$0xff]
    %v432 = vld [vmem:[#allocation2 + $0xc8] sm:$0xff]
    %v433 = vld [vmem:[#allocation2 + $0xd0] sm:$0xff]
    %v434 = vld [vmem:[#allocation2 + $0xd8] sm:$0xff]
    %v435 = vld [vmem:[#allocation2 + $0xe0] sm:$0xff]
    %v436 = vld [vmem:[#allocation2 + $0xe8] sm:$0xff]
    %v437 = vld [vmem:[#allocation2 + $0xf0] sm:$0xff]
    %v438 = vld [vmem:[#allocation2 + $0xf8] sm:$0xff]
    %v439 = vld [vmem:[%s4] ss:$4 sm:$0x3]
    %v441 = vlaneseq
    %v442 = vshrl.u32 %v441, 7
    %v443 = vsub.s32 0, %v442
    %v444 = vrot.slane %v439, %v443
    %v445 = vlaneseq
    %v446 = vshrl.u32 %v445, 7
    %v447 = vsub.s32 1, %v446
    %v448 = vrot.slane %v439, %v447
    %v483 = vunpack.c.l.b16 %v407
    %v484 = vunpack.c.h.b16 %v407
    %v485 = vunpack.c.l.b16 %v408
    %v486 = vunpack.c.h.b16 %v408
    %v487 = vunpack.c.l.b16 %v409
    %v488 = vunpack.c.h.b16 %v409
    %v489 = vunpack.c.l.b16 %v410
    %v490 = vunpack.c.h.b16 %v410
    %v491 = vunpack.c.l.b16 %v411
    %v492 = vunpack.c.h.b16 %v411
    %v493 = vunpack.c.l.b16 %v412
    %v494 = vunpack.c.h.b16 %v412
    %v495 = vunpack.c.l.b16 %v413
    %v496 = vunpack.c.h.b16 %v413
    %v497 = vunpack.c.l.b16 %v414
    %v498 = vunpack.c.h.b16 %v414
    %v499 = vunpack.c.l.b16 %v415
    %v500 = vunpack.c.h.b16 %v415
    %v501 = vunpack.c.l.b16 %v416
    %v502 = vunpack.c.h.b16 %v416
    %v503 = vunpack.c.l.b16 %v417
    %v504 = vunpack.c.h.b16 %v417
    %v505 = vunpack.c.l.b16 %v418
    %v506 = vunpack.c.h.b16 %v418
    %v507 = vunpack.c.l.b16 %v419
    %v508 = vunpack.c.h.b16 %v419
    %v509 = vunpack.c.l.b16 %v420
    %v510 = vunpack.c.h.b16 %v420
    %v511 = vunpack.c.l.b16 %v421
    %v512 = vunpack.c.h.b16 %v421
    %v513 = vunpack.c.l.b16 %v422
    %v514 = vunpack.c.h.b16 %v422
    %v515 = vunpack.c.l.b16 %v423
    %v516 = vunpack.c.h.b16 %v423
    %v517 = vunpack.c.l.b16 %v424
    %v518 = vunpack.c.h.b16 %v424
    %v519 = vunpack.c.l.b16 %v425
    %v520 = vunpack.c.h.b16 %v425
    %v521 = vunpack.c.l.b16 %v426
    %v522 = vunpack.c.h.b16 %v426
    %v523 = vunpack.c.l.b16 %v427
    %v524 = vunpack.c.h.b16 %v427
    %v525 = vunpack.c.l.b16 %v428
    %v526 = vunpack.c.h.b16 %v428
    %v527 = vunpack.c.l.b16 %v429
    %v528 = vunpack.c.h.b16 %v429
    %v529 = vunpack.c.l.b16 %v430
    %v530 = vunpack.c.h.b16 %v430
    %v531 = vunpack.c.l.b16 %v431
    %v532 = vunpack.c.h.b16 %v431
    %v533 = vunpack.c.l.b16 %v432
    %v534 = vunpack.c.h.b16 %v432
    %v535 = vunpack.c.l.b16 %v433
    %v536 = vunpack.c.h.b16 %v433
    %v537 = vunpack.c.l.b16 %v434
    %v538 = vunpack.c.h.b16 %v434
    %v539 = vunpack.c.l.b16 %v435
    %v540 = vunpack.c.h.b16 %v435
    %v541 = vunpack.c.l.b16 %v436
    %v542 = vunpack.c.h.b16 %v436
    %v543 = vunpack.c.l.b16 %v437
    %v544 = vunpack.c.h.b16 %v437
    %v545 = vunpack.c.l.b16 %v438
    %v546 = vunpack.c.h.b16 %v438
    %v547 = vpack.c.b16 %v485, %v483
    %v548 = vpack.c.b16 %v486, %v484
    %v549 = vpack.c.b16 %v489, %v487
    %v550 = vpack.c.b16 %v490, %v488
    %v551 = vpack.c.b16 %v493, %v491
    %v552 = vpack.c.b16 %v494, %v492
    %v553 = vpack.c.b16 %v497, %v495
    %v554 = vpack.c.b16 %v498, %v496
    %v555 = vpack.c.b16 %v501, %v499
    %v556 = vpack.c.b16 %v502, %v500
    %v557 = vpack.c.b16 %v505, %v503
    %v558 = vpack.c.b16 %v506, %v504
    %v559 = vpack.c.b16 %v509, %v507
    %v560 = vpack.c.b16 %v510, %v508
    %v561 = vpack.c.b16 %v513, %v511
    %v562 = vpack.c.b16 %v514, %v512
    %v563 = vpack.c.b16 %v517, %v515
    %v564 = vpack.c.b16 %v518, %v516
    %v565 = vpack.c.b16 %v521, %v519
    %v566 = vpack.c.b16 %v522, %v520
    %v567 = vpack.c.b16 %v525, %v523
    %v568 = vpack.c.b16 %v526, %v524
    %v569 = vpack.c.b16 %v529, %v527
    %v570 = vpack.c.b16 %v530, %v528
    %v571 = vpack.c.b16 %v533, %v531
    %v572 = vpack.c.b16 %v534, %v532
    %v573 = vpack.c.b16 %v537, %v535
    %v574 = vpack.c.b16 %v538, %v536
    %v575 = vpack.c.b16 %v541, %v539
    %v576 = vpack.c.b16 %v542, %v540
    %v577 = vpack.c.b16 %v545, %v543
    %v578 = vpack.c.b16 %v546, %v544
    %611 = vmatprep.subr.bf16.mxu0 %v562
    %612 = vmatpush1.bf16.msra.mxu0 %v561
    %613 = vmatprep.subr.bf16.mxu0 %v560
    %614 = vmatpush1.bf16.msra.mxu0 %v559
    %615 = vmatprep.subr.bf16.mxu0 %v558
    %616 = vmatpush1.bf16.msra.mxu0 %v557
    %617 = vmatprep.subr.bf16.mxu0 %v556
    %618 = vmatpush1.bf16.msra.mxu0 %v555
    %619 = vmatprep.subr.bf16.mxu0 %v554
    %620 = vmatpush1.bf16.msra.mxu0 %v553
    %621 = vmatprep.subr.bf16.mxu0 %v552
    %622 = vmatpush1.bf16.msra.mxu0 %v551
    %623 = vmatprep.subr.bf16.mxu0 %v550
    %624 = vmatpush1.bf16.msra.mxu0 %v549
    %625 = vmatprep.subr.bf16.mxu0 %v548
    %626 = vmatpush1.bf16.msra.mxu0 %v547
    %627 = vmatprep.subr.bf16.mxu0 %v578
    %628 = vmatpush2.bf16.msra.mxu0 %v577
    %629 = vmatprep.subr.bf16.mxu0 %v576
    %630 = vmatpush2.bf16.msra.mxu0 %v575
    %631 = vmatprep.subr.bf16.mxu0 %v574
    %632 = vmatpush2.bf16.msra.mxu0 %v573
    %633 = vmatprep.subr.bf16.mxu0 %v572
    %634 = vmatpush2.bf16.msra.mxu0 %v571
    %635 = vmatprep.subr.bf16.mxu0 %v570
    %636 = vmatpush2.bf16.msra.mxu0 %v569
    %637 = vmatprep.subr.bf16.mxu0 %v568
    %638 = vmatpush2.bf16.msra.mxu0 %v567
    %639 = vmatprep.subr.bf16.mxu0 %v566
    %640 = vmatpush2.bf16.msra.mxu0 %v565
    %641 = vmatprep.subr.bf16.mxu0 %v564
    %642 = vmatpush2.bf16.msra.mxu0 %v563
    %643 = vmatprep.mubr.bf16.mxu0 %v400
    %644 = vmatmul.mubr.bf16.gmra.mxu0 %v399
    %v645 = vpop.f32.mrf.mxu0
    %v646 = vadd.f32 %v444, %v645
    %v647 = vpop.f32.mrf.mxu0
    %v648 = vadd.f32 %v448, %v647
    %v649 = vpop.f32.mrf.mxu0
    %v650 = vadd.f32 %v444, %v649
    %v651 = vpop.f32.mrf.mxu0
    %v652 = vadd.f32 %v448, %v651
    %653 = vmatprep.mubr.bf16.mxu0 %v402
    %654 = vmatmul.mubr.bf16.gmra.mxu0 %v401
    %v655 = vpop.f32.mrf.mxu0
    %v656 = vadd.f32 %v444, %v655
    %v657 = vpop.f32.mrf.mxu0
    %v658 = vadd.f32 %v448, %v657
    %v659 = vpop.f32.mrf.mxu0
    %v660 = vadd.f32 %v444, %v659
    %v661 = vpop.f32.mrf.mxu0
    %v662 = vadd.f32 %v448, %v661
    %663 = vmatprep.mubr.bf16.mxu0 %v404
    %664 = vmatmul.mubr.bf16.gmra.mxu0 %v403
    %v665 = vpop.f32.mrf.mxu0
    %v666 = vadd.f32 %v444, %v665
    %v667 = vpop.f32.mrf.mxu0
    %v668 = vadd.f32 %v448, %v667
    %v669 = vpop.f32.mrf.mxu0
    %v670 = vadd.f32 %v444, %v669
    %v671 = vpop.f32.mrf.mxu0
    %v672 = vadd.f32 %v448, %v671
    %673 = vmatprep.mubr.bf16.mxu0 %v406
    %674 = vmatmul.mubr.bf16.gmra.mxu0 %v405
    %v675 = vpop.f32.mrf.mxu0
    %v676 = vadd.f32 %v444, %v675
    %v677 = vpop.f32.mrf.mxu0
    %v678 = vadd.f32 %v448, %v677
    %v679 = vpop.f32.mrf.mxu0
    %v680 = vadd.f32 %v444, %v679
    %v681 = vpop.f32.mrf.mxu0
    %v682 = vadd.f32 %v448, %v681
    %683 = vdwg.mxu0
    %s684 = scalar_lea.vmem %s4, 1
    %v685 = vld [vmem:[%s684] ss:$4 sm:$0x3]
    %s686 = scalar_lea.vmem %s4, 2
    %v687 = vld [vmem:[%s686] ss:$4 sm:$0x3]
    %v688 = vadd.f32 %v646, %v648
    %689 = vadd.xlane.f32.xlu0 %v688
    %v690 = vpop.xlane.xlu0 %689
    %v691 = vadd.f32 %v650, %v652
    %692 = vadd.xlane.f32.xlu0 %v691
    %v693 = vpop.xlane.xlu0 %692
    %v694 = vadd.f32 %v656, %v658
    %695 = vadd.xlane.f32.xlu0 %v694
    %v696 = vpop.xlane.xlu0 %695
    %v697 = vadd.f32 %v660, %v662
    %698 = vadd.xlane.f32.xlu0 %v697
    %v699 = vpop.xlane.xlu0 %698
    %v700 = vadd.f32 %v666, %v668
    %701 = vadd.xlane.f32.xlu0 %v700
    %v702 = vpop.xlane.xlu0 %701
    %v703 = vadd.f32 %v670, %v672
    %704 = vadd.xlane.f32.xlu0 %v703
    %v705 = vpop.xlane.xlu0 %704
    %v706 = vadd.f32 %v676, %v678
    %707 = vadd.xlane.f32.xlu0 %v706
    %v708 = vpop.xlane.xlu0 %707
    %v709 = vadd.f32 %v680, %v682
    %710 = vadd.xlane.f32.xlu0 %v709
    %v711 = vpop.xlane.xlu0 %710
    %v712 = vmul.f32 %v690, %v224
    %v713 = vmul.f32 %v693, %v224
    %v714 = vmul.f32 %v696, %v224
    %v715 = vmul.f32 %v699, %v224
    %v716 = vmul.f32 %v702, %v224
    %v717 = vmul.f32 %v705, %v224
    %v718 = vmul.f32 %v708, %v224
    %v719 = vmul.f32 %v711, %v224
    %v720 = vsub.f32 %v646, %v712
    %v721 = vsub.f32 %v648, %v712
    %v722 = vsub.f32 %v650, %v713
    %v723 = vsub.f32 %v652, %v713
    %v724 = vsub.f32 %v656, %v714
    %v725 = vsub.f32 %v658, %v714
    %v726 = vsub.f32 %v660, %v715
    %v727 = vsub.f32 %v662, %v715
    %v728 = vsub.f32 %v666, %v716
    %v729 = vsub.f32 %v668, %v716
    %v730 = vsub.f32 %v670, %v717
    %v731 = vsub.f32 %v672, %v717
    %v732 = vsub.f32 %v676, %v718
    %v733 = vsub.f32 %v678, %v718
    %v734 = vsub.f32 %v680, %v719
    %v735 = vsub.f32 %v682, %v719
    %v736 = vmul.f32 %v720, %v720
    %v737 = vmul.f32 %v721, %v721
    %v738 = vmul.f32 %v722, %v722
    %v739 = vmul.f32 %v723, %v723
    %v740 = vmul.f32 %v724, %v724
    %v741 = vmul.f32 %v725, %v725
    %v742 = vmul.f32 %v726, %v726
    %v743 = vmul.f32 %v727, %v727
    %v744 = vmul.f32 %v728, %v728
    %v745 = vmul.f32 %v729, %v729
    %v746 = vmul.f32 %v730, %v730
    %v747 = vmul.f32 %v731, %v731
    %v748 = vmul.f32 %v732, %v732
    %v749 = vmul.f32 %v733, %v733
    %v750 = vmul.f32 %v734, %v734
    %v751 = vmul.f32 %v735, %v735
    %v752 = vadd.f32 %v736, %v737
    %753 = vadd.xlane.f32.xlu0 %v752
    %v754 = vpop.xlane.xlu0 %753
    %v755 = vadd.f32 %v738, %v739
    %756 = vadd.xlane.f32.xlu0 %v755
    %v757 = vpop.xlane.xlu0 %756
    %v758 = vadd.f32 %v740, %v741
    %759 = vadd.xlane.f32.xlu0 %v758
    %v760 = vpop.xlane.xlu0 %759
    %v761 = vadd.f32 %v742, %v743
    %762 = vadd.xlane.f32.xlu0 %v761
    %v763 = vpop.xlane.xlu0 %762
    %v764 = vadd.f32 %v744, %v745
    %765 = vadd.xlane.f32.xlu0 %v764
    %v766 = vpop.xlane.xlu0 %765
    %v767 = vadd.f32 %v746, %v747
    %768 = vadd.xlane.f32.xlu0 %v767
    %v769 = vpop.xlane.xlu0 %768
    %v770 = vadd.f32 %v748, %v749
    %771 = vadd.xlane.f32.xlu0 %v770
    %v772 = vpop.xlane.xlu0 %771
    %v773 = vadd.f32 %v750, %v751
    %774 = vadd.xlane.f32.xlu0 %v773
    %v775 = vpop.xlane.xlu0 %774
    %v776 = vmul.f32 %v754, %v224
    %v777 = vmul.f32 %v757, %v224
    %v778 = vmul.f32 %v760, %v224
    %v779 = vmul.f32 %v763, %v224
    %v780 = vmul.f32 %v766, %v224
    %v781 = vmul.f32 %v769, %v224
    %v782 = vmul.f32 %v772, %v224
    %v783 = vmul.f32 %v775, %v224
    %v784 = vadd.f32 %v776, 1e-05
    %v785 = vadd.f32 %v777, 1e-05
    %v786 = vadd.f32 %v778, 1e-05
    %v787 = vadd.f32 %v779, 1e-05
    %v788 = vadd.f32 %v780, 1e-05
    %v789 = vadd.f32 %v781, 1e-05
    %v790 = vadd.f32 %v782, 1e-05
    %v791 = vadd.f32 %v783, 1e-05
    %v792 = vrsqrt.pop %v784
    %v793 = vrsqrt.pop %v785
    %v794 = vrsqrt.pop %v786
    %v795 = vrsqrt.pop %v787
    %v796 = vrsqrt.pop %v788
    %v797 = vrsqrt.pop %v789
    %v798 = vrsqrt.pop %v790
    %v799 = vrsqrt.pop %v791
    %v800 = vmul.f32 %v720, %v792
    %v801 = vmul.f32 %v721, %v792
    %v802 = vmul.f32 %v722, %v793
    %v803 = vmul.f32 %v723, %v793
    %v804 = vmul.f32 %v724, %v794
    %v805 = vmul.f32 %v725, %v794
    %v806 = vmul.f32 %v726, %v795
    %v807 = vmul.f32 %v727, %v795
    %v808 = vmul.f32 %v728, %v796
    %v809 = vmul.f32 %v729, %v796
    %v810 = vmul.f32 %v730, %v797
    %v811 = vmul.f32 %v731, %v797
    %v812 = vmul.f32 %v732, %v798
    %v813 = vmul.f32 %v733, %v798
    %v814 = vmul.f32 %v734, %v799
    %v815 = vmul.f32 %v735, %v799
    %v817 = vlaneseq
    %v818 = vshrl.u32 %v817, 7
    %v819 = vsub.s32 0, %v818
    %v820 = vrot.slane %v685, %v819
    %v821 = vlaneseq
    %v822 = vshrl.u32 %v821, 7
    %v823 = vsub.s32 1, %v822
    %v824 = vrot.slane %v685, %v823
    %v827 = vmul.f32 %v800, %v820
    %v828 = vmul.f32 %v801, %v824
    %v829 = vmul.f32 %v802, %v820
    %v830 = vmul.f32 %v803, %v824
    %v831 = vmul.f32 %v804, %v820
    %v832 = vmul.f32 %v805, %v824
    %v833 = vmul.f32 %v806, %v820
    %v834 = vmul.f32 %v807, %v824
    %v835 = vmul.f32 %v808, %v820
    %v836 = vmul.f32 %v809, %v824
    %v837 = vmul.f32 %v810, %v820
    %v838 = vmul.f32 %v811, %v824
    %v839 = vmul.f32 %v812, %v820
    %v840 = vmul.f32 %v813, %v824
    %v841 = vmul.f32 %v814, %v820
    %v842 = vmul.f32 %v815, %v824
    %v844 = vlaneseq
    %v845 = vshrl.u32 %v844, 7
    %v846 = vsub.s32 0, %v845
    %v847 = vrot.slane %v687, %v846
    %v848 = vlaneseq
    %v849 = vshrl.u32 %v848, 7
    %v850 = vsub.s32 1, %v849
    %v851 = vrot.slane %v687, %v850
    %v854 = vadd.f32 %v827, %v847
    %v855 = vadd.f32 %v828, %v851
    %v856 = vadd.f32 %v829, %v847
    %v857 = vadd.f32 %v830, %v851
    %v858 = vadd.f32 %v831, %v847
    %v859 = vadd.f32 %v832, %v851
    %v860 = vadd.f32 %v833, %v847
    %v861 = vadd.f32 %v834, %v851
    %v862 = vadd.f32 %v835, %v847
    %v863 = vadd.f32 %v836, %v851
    %v864 = vadd.f32 %v837, %v847
    %v865 = vadd.f32 %v838, %v851
    %v866 = vadd.f32 %v839, %v847
    %v867 = vadd.f32 %v840, %v851
    %v868 = vadd.f32 %v841, %v847
    %v869 = vadd.f32 %v842, %v851
    %v870 = vmax.f32 %v854, 0.0
    %v871 = vmax.f32 %v855, 0.0
    %v872 = vmax.f32 %v856, 0.0
    %v873 = vmax.f32 %v857, 0.0
    %v874 = vmax.f32 %v858, 0.0
    %v875 = vmax.f32 %v859, 0.0
    %v876 = vmax.f32 %v860, 0.0
    %v877 = vmax.f32 %v861, 0.0
    %v878 = vmax.f32 %v862, 0.0
    %v879 = vmax.f32 %v863, 0.0
    %v880 = vmax.f32 %v864, 0.0
    %v881 = vmax.f32 %v865, 0.0
    %v882 = vmax.f32 %v866, 0.0
    %v883 = vmax.f32 %v867, 0.0
    %v884 = vmax.f32 %v868, 0.0
    %v885 = vmax.f32 %v869, 0.0
    %v886 = vpack.c.bf16 %v872, %v870
    %v887 = vpack.c.bf16 %v873, %v871
    %v888 = vpack.c.bf16 %v876, %v874
    %v889 = vpack.c.bf16 %v877, %v875
    %v890 = vpack.c.bf16 %v880, %v878
    %v891 = vpack.c.bf16 %v881, %v879
    %v892 = vpack.c.bf16 %v884, %v882
    %v893 = vpack.c.bf16 %v885, %v883
    %v894 = vld [vmem:[%s5] sm:$0xf]
    %v895 = vld [vmem:[%s5 + $0x4] sm:$0xf]
    %v896 = vld [vmem:[%s5 + $0x8] sm:$0xf]
    %v897 = vld [vmem:[%s5 + $0xc] sm:$0xf]
    %v898 = vld [vmem:[%s5 + $0x10] sm:$0xf]
    %v899 = vld [vmem:[%s5 + $0x14] sm:$0xf]
    %v900 = vld [vmem:[%s5 + $0x18] sm:$0xf]
    %v901 = vld [vmem:[%s5 + $0x1c] sm:$0xf]
    %v902 = vld [vmem:[%s5 + $0x20] sm:$0xf]
    %v903 = vld [vmem:[%s5 + $0x24] sm:$0xf]
    %v904 = vld [vmem:[%s5 + $0x28] sm:$0xf]
    %v905 = vld [vmem:[%s5 + $0x2c] sm:$0xf]
    %v906 = vld [vmem:[%s5 + $0x30] sm:$0xf]
    %v907 = vld [vmem:[%s5 + $0x34] sm:$0xf]
    %v908 = vld [vmem:[%s5 + $0x38] sm:$0xf]
    %v909 = vld [vmem:[%s5 + $0x3c] sm:$0xf]
    %v910 = vld [vmem:[%s5 + $0x40] sm:$0xf]
    %v911 = vld [vmem:[%s5 + $0x44] sm:$0xf]
    %v912 = vld [vmem:[%s5 + $0x48] sm:$0xf]
    %v913 = vld [vmem:[%s5 + $0x4c] sm:$0xf]
    %v914 = vld [vmem:[%s5 + $0x50] sm:$0xf]
    %v915 = vld [vmem:[%s5 + $0x54] sm:$0xf]
    %v916 = vld [vmem:[%s5 + $0x58] sm:$0xf]
    %v917 = vld [vmem:[%s5 + $0x5c] sm:$0xf]
    %v918 = vld [vmem:[%s5 + $0x60] sm:$0xf]
    %v919 = vld [vmem:[%s5 + $0x64] sm:$0xf]
    %v920 = vld [vmem:[%s5 + $0x68] sm:$0xf]
    %v921 = vld [vmem:[%s5 + $0x6c] sm:$0xf]
    %v922 = vld [vmem:[%s5 + $0x70] sm:$0xf]
    %v923 = vld [vmem:[%s5 + $0x74] sm:$0xf]
    %v924 = vld [vmem:[%s5 + $0x78] sm:$0xf]
    %v925 = vld [vmem:[%s5 + $0x7c] sm:$0xf]
    %v926 = vld [vmem:[%s6] sm:$0x1]
    %v928 = vlaneseq
    %v929 = vshrl.u32 %v928, 7
    %v930 = vsub.s32 0, %v929
    %v931 = vrot.slane %v926, %v930
    %v965 = vunpack.c.l.b16 %v894
    %v966 = vunpack.c.l.b16 %v895
    %v967 = vunpack.c.l.b16 %v896
    %v968 = vunpack.c.l.b16 %v897
    %v969 = vunpack.c.l.b16 %v898
    %v970 = vunpack.c.l.b16 %v899
    %v971 = vunpack.c.l.b16 %v900
    %v972 = vunpack.c.l.b16 %v901
    %v973 = vunpack.c.l.b16 %v902
    %v974 = vunpack.c.l.b16 %v903
    %v975 = vunpack.c.l.b16 %v904
    %v976 = vunpack.c.l.b16 %v905
    %v977 = vunpack.c.l.b16 %v906
    %v978 = vunpack.c.l.b16 %v907
    %v979 = vunpack.c.l.b16 %v908
    %v980 = vunpack.c.l.b16 %v909
    %v981 = vunpack.c.l.b16 %v910
    %v982 = vunpack.c.l.b16 %v911
    %v983 = vunpack.c.l.b16 %v912
    %v984 = vunpack.c.l.b16 %v913
    %v985 = vunpack.c.l.b16 %v914
    %v986 = vunpack.c.l.b16 %v915
    %v987 = vunpack.c.l.b16 %v916
    %v988 = vunpack.c.l.b16 %v917
    %v989 = vunpack.c.l.b16 %v918
    %v990 = vunpack.c.l.b16 %v919
    %v991 = vunpack.c.l.b16 %v920
    %v992 = vunpack.c.l.b16 %v921
    %v993 = vunpack.c.l.b16 %v922
    %v994 = vunpack.c.l.b16 %v923
    %v995 = vunpack.c.l.b16 %v924
    %v996 = vunpack.c.l.b16 %v925
    %v997 = vpack.c.b16 %v966, %v965
    %v998 = vpack.c.b16 %v968, %v967
    %v999 = vpack.c.b16 %v970, %v969
    %v1000 = vpack.c.b16 %v972, %v971
    %v1001 = vpack.c.b16 %v974, %v973
    %v1002 = vpack.c.b16 %v976, %v975
    %v1003 = vpack.c.b16 %v978, %v977
    %v1004 = vpack.c.b16 %v980, %v979
    %v1005 = vpack.c.b16 %v982, %v981
    %v1006 = vpack.c.b16 %v984, %v983
    %v1007 = vpack.c.b16 %v986, %v985
    %v1008 = vpack.c.b16 %v988, %v987
    %v1009 = vpack.c.b16 %v990, %v989
    %v1010 = vpack.c.b16 %v992, %v991
    %v1011 = vpack.c.b16 %v994, %v993
    %v1012 = vpack.c.b16 %v996, %v995
    %1029 = vmatprep.subr.bf16.mxu0 0
    %1030 = vmatpush1.bf16.msra.mxu0 %v1004
    %1031 = vmatprep.subr.bf16.mxu0 0
    %1032 = vmatpush1.bf16.msra.mxu0 %v1003
    %1033 = vmatprep.subr.bf16.mxu0 0
    %1034 = vmatpush1.bf16.msra.mxu0 %v1002
    %1035 = vmatprep.subr.bf16.mxu0 0
    %1036 = vmatpush1.bf16.msra.mxu0 %v1001
    %1037 = vmatprep.subr.bf16.mxu0 0
    %1038 = vmatpush1.bf16.msra.mxu0 %v1000
    %1039 = vmatprep.subr.bf16.mxu0 0
    %1040 = vmatpush1.bf16.msra.mxu0 %v999
    %1041 = vmatprep.subr.bf16.mxu0 0
    %1042 = vmatpush1.bf16.msra.mxu0 %v998
    %1043 = vmatprep.subr.bf16.mxu0 0
    %1044 = vmatpush1.bf16.msra.mxu0 %v997
    %1045 = vmatprep.subr.bf16.mxu0 0
    %1046 = vmatpush2.bf16.msra.mxu0 %v1012
    %1047 = vmatprep.subr.bf16.mxu0 0
    %1048 = vmatpush2.bf16.msra.mxu0 %v1011
    %1049 = vmatprep.subr.bf16.mxu0 0
    %1050 = vmatpush2.bf16.msra.mxu0 %v1010
    %1051 = vmatprep.subr.bf16.mxu0 0
    %1052 = vmatpush2.bf16.msra.mxu0 %v1009
    %1053 = vmatprep.subr.bf16.mxu0 0
    %1054 = vmatpush2.bf16.msra.mxu0 %v1008
    %1055 = vmatprep.subr.bf16.mxu0 0
    %1056 = vmatpush2.bf16.msra.mxu0 %v1007
    %1057 = vmatprep.subr.bf16.mxu0 0
    %1058 = vmatpush2.bf16.msra.mxu0 %v1006
    %1059 = vmatprep.subr.bf16.mxu0 0
    %1060 = vmatpush2.bf16.msra.mxu0 %v1005
    %1061 = vmatprep.mubr.bf16.mxu0 %v887
    %1062 = vmatmul.mubr.bf16.gmra.mxu0 %v886
    %v1063 = vpop.f32.mrf.mxu0
    %v1064 = vadd.f32 %v931, %v1063
    %v1065 = vpop.f32.mrf.mxu0
    %v1066 = vpop.f32.mrf.mxu0
    %v1067 = vadd.f32 %v931, %v1066
    %v1068 = vpop.f32.mrf.mxu0
    %1069 = vmatprep.mubr.bf16.mxu0 %v889
    %1070 = vmatmul.mubr.bf16.gmra.mxu0 %v888
    %v1071 = vpop.f32.mrf.mxu0
    %v1072 = vadd.f32 %v931, %v1071
    %v1073 = vpop.f32.mrf.mxu0
    %v1074 = vpop.f32.mrf.mxu0
    %v1075 = vadd.f32 %v931, %v1074
    %v1076 = vpop.f32.mrf.mxu0
    %1077 = vmatprep.mubr.bf16.mxu0 %v891
    %1078 = vmatmul.mubr.bf16.gmra.mxu0 %v890
    %v1079 = vpop.f32.mrf.mxu0
    %v1080 = vadd.f32 %v931, %v1079
    %v1081 = vpop.f32.mrf.mxu0
    %v1082 = vpop.f32.mrf.mxu0
    %v1083 = vadd.f32 %v931, %v1082
    %v1084 = vpop.f32.mrf.mxu0
    %1085 = vmatprep.mubr.bf16.mxu0 %v893
    %1086 = vmatmul.mubr.bf16.gmra.mxu0 %v892
    %v1087 = vpop.f32.mrf.mxu0
    %v1088 = vadd.f32 %v931, %v1087
    %v1089 = vpop.f32.mrf.mxu0
    %v1090 = vpop.f32.mrf.mxu0
    %v1091 = vadd.f32 %v931, %v1090
    %v1092 = vpop.f32.mrf.mxu0
    %1093 = vdwg.mxu0
    %vm1094 = vcmask 23552
    %1095 = vst.msk [vmem:[%s7] sm:$0xff] %vm1094, %v1064
    %1096 = vst.msk [vmem:[%s7 + $0x8] sm:$0xff] %vm1094, %v1067
    %1097 = vst.msk [vmem:[%s7 + $0x10] sm:$0xff] %vm1094, %v1072
    %1098 = vst.msk [vmem:[%s7 + $0x18] sm:$0xff] %vm1094, %v1075
    %1099 = vst.msk [vmem:[%s7 + $0x20] sm:$0xff] %vm1094, %v1080
    %1100 = vst.msk [vmem:[%s7 + $0x28] sm:$0xff] %vm1094, %v1083
    %1101 = vst.msk [vmem:[%s7 + $0x30] sm:$0xff] %vm1094, %v1088
    %1102 = vst.msk [vmem:[%s7 + $0x38] sm:$0xff] %vm1094, %v1091
    // Predicated region
    $region34: #{tpu_custom_call.1} parent=1 // pred_check
      _
    $region35: #{tpu_custom_call.1} parent=1 // pred_check_branch
      %1104 = sbr.rel (0) target = $region37
    $region36: #{tpu_custom_call.1} parent=1 // pred_region
      _
    $region37: #{tpu_custom_call.1} parent=1 // pred_fallthru
      _
    // Predicated region
    $region38: #{tpu_custom_call.1} parent=1 // pred_check
      _
    $region39: #{tpu_custom_call.1} parent=1 // pred_check_branch
      %1106 = sbr.rel (0) target = $region41
    $region40: #{tpu_custom_call.1} parent=1 // pred_region
      _
    $region41: #{tpu_custom_call.1} parent=1 // pred_fallthru
      _
    %1107 = vsyncpa [#allocation3], 1

</llo_original>
